<compile_context>
chip_gen: v7x
topology: tpu7x:2x2x1
jax: 0.10.0
libtpu: 0.0.40
codegen_flags: <defaults>
</compile_context>

<pallas_src>
import jax
import jax.numpy as jnp
from jax import lax
from jax.experimental import pallas as pl
from jax.experimental.pallas import tpu as pltpu

# Dataset-consistent sizes (Rumelhart semantic network style):
NOBJ = 8            # len(names_items)
NREL = 4            # len(names_relations)
NATTR = 36          # len(names_attributes)
REP_SIZE = NOBJ     # rep_size = nobj
HIDDEN = 40         # hidden_size
IN_DIM = NOBJ + NREL

LANES = 128         # lane width of the padded/packed layout
# Packed lane layout of the single output slab:
REP_OFF = 0                       # rep    -> lanes [0, 8)
HID_OFF = REP_OFF + REP_SIZE      # hidden -> lanes [8, 48)
OUT_OFF = HID_OFF + HIDDEN        # output -> lanes [48, 84)
ONE_LANE = LANES - 1              # constant-1 lane used to fold biases into weights


def _round_up(n, m):
    return ((n + m - 1) // m) * m


def net_kernel(x_ref, w_ref, out_ref):
    # x_ref:   [BB, 128]  x_item @ lanes 0:8, x_rel @ 8:12, 1.0 @ lane 127
    # w_ref:   [3, 128, 128]  zero-padded weight slab (biases folded in at row 127)
    # out_ref: [BB, 128]  packed (rep | hidden | sigmoid-out | pad)
    x = x_ref[...]
    lane = lax.broadcasted_iota(jnp.int32, x.shape, 1)

    # fc1 (+bias via the constant-1 lane) + relu  -> rep at lanes [0, 8), zeros elsewhere
    rep = jnp.maximum(
        jnp.dot(x, w_ref[0], preferred_element_type=jnp.float32), 0.0)

    # cat([rep, x_rel]): rep fills lanes 0:8, x_rel already sits at lanes 8:12 of x,
    # and x's 1-lane (127) rides along to provide the fc2 bias.
    z = jnp.where(lane < HID_OFF, rep, x)

    # fc2 + relu -> hidden at lanes [8, 48); w2f[127,127] = 1 re-emits the 1-lane
    hidden = jnp.maximum(
        jnp.dot(z, w_ref[1], preferred_element_type=jnp.float32), 0.0)

    # fc3 (+bias via lane 127 of hidden) + sigmoid -> output at lanes [48, 84)
    logits = jnp.dot(hidden, w_ref[2], preferred_element_type=jnp.float32)
    out = jax.nn.sigmoid(logits)

    # Single lane-dense packed store: [rep | hidden | sigmoid-out | pad]
    out_ref[...] = jnp.where(lane < OUT_OFF, rep + hidden, out)


def pack_params(params):
    """Fold (w1,b1,w2,b2,w3,b3) into one [3,128,128] zero-padded weight slab."""
    w1, b1, w2, b2, w3, b3 = params
    f32 = jnp.float32

    # fc1: x_item lanes 0:8 -> rep lanes 0:8; bias on the constant-1 row.
    w1f = jnp.zeros((LANES, LANES), f32)
    w1f = w1f.at[:NOBJ, REP_OFF:REP_OFF + REP_SIZE].set(w1.astype(f32))
    w1f = w1f.at[ONE_LANE, REP_OFF:REP_OFF + REP_SIZE].set(b1.astype(f32))

    # fc2: cat([rep, x_rel]) lanes 0:12 -> hidden lanes 8:48; bias on row 127;
    # w2f[127,127] = 1 propagates the constant-1 lane through relu for fc3's bias.
    w2f = jnp.zeros((LANES, LANES), f32)
    w2f = w2f.at[:REP_SIZE + NREL, HID_OFF:HID_OFF + HIDDEN].set(w2.astype(f32))
    w2f = w2f.at[ONE_LANE, HID_OFF:HID_OFF + HIDDEN].set(b2.astype(f32))
    w2f = w2f.at[ONE_LANE, ONE_LANE].set(1.0)

    # fc3: hidden lanes 8:48 -> output lanes 48:84; bias on row 127.
    w3f = jnp.zeros((LANES, LANES), f32)
    w3f = w3f.at[HID_OFF:HID_OFF + HIDDEN, OUT_OFF:OUT_OFF + NATTR].set(w3.astype(f32))
    w3f = w3f.at[ONE_LANE, OUT_OFF:OUT_OFF + NATTR].set(b3.astype(f32))

    return jnp.stack([w1f, w2f, w3f])    # [3, 128, 128]


@jax.jit
def net_forward(x, params):
    """x: [..., NOBJ + NREL] float32 -> (output[B,36], hidden[B,40], rep[B,8])."""
    x = x.reshape(-1, IN_DIM).astype(jnp.float32)
    B = x.shape[0]

    w_all = pack_params(params)

    # Batch tiling: block is a multiple of 8 sublanes; big blocks amortize per-step cost.
    block_b = min(256, _round_up(B, 8))
    b_pad = _round_up(B, block_b)
    n_blk = b_pad // block_b

    # Lane-padded input: x_item @ 0:8, x_rel @ 8:12, constant 1.0 @ lane 127 (bias lane).
    xp = jnp.zeros((b_pad, LANES), jnp.float32)
    xp = xp.at[:B, :IN_DIM].set(x)
    xp = xp.at[:, ONE_LANE].set(1.0)

    cost = pl.CostEstimate(
        flops=2 * b_pad * (NOBJ * REP_SIZE + (REP_SIZE + NREL) * HIDDEN + HIDDEN * NATTR),
        transcendentals=b_pad * NATTR,
        bytes_accessed=4 * (2 * b_pad * LANES + 3 * LANES * LANES),
    )

    packed = pl.pallas_call(
        net_kernel,
        out_shape=jax.ShapeDtypeStruct((b_pad, LANES), jnp.float32),
        grid=(n_blk,),
        in_specs=[
            pl.BlockSpec((block_b, LANES), lambda i: (i, 0)),          # x tiles
            pl.BlockSpec((3, LANES, LANES), lambda i: (0, 0, 0)),      # weights: VMEM-resident
        ],
        out_specs=pl.BlockSpec((block_b, LANES), lambda i: (i, 0)),
        compiler_params=pltpu.CompilerParams(dimension_semantics=("parallel",)),
        cost_estimate=cost,
    )(xp, w_all)

    output = packed[:B, OUT_OFF:OUT_OFF + NATTR]
    hidden = packed[:B, HID_OFF:HID_OFF + HIDDEN]
    rep = packed[:B, REP_OFF:REP_OFF + REP_SIZE]
    return output, hidden, rep


def init_params(key):
    """Deterministic init mimicking torch.nn.Linear default (U[-1/sqrt(fan_in), ...]).
    Weights are stored transposed vs. torch: [in_features, out_features]."""
    ks = jax.random.split(key, 6)

    def lin(kw, kb, fan_in, fan_out):
        bound = 1.0 / (fan_in ** 0.5)
        w = jax.random.uniform(kw, (fan_in, fan_out), jnp.float32, -bound, bound)
        b = jax.random.uniform(kb, (fan_out,), jnp.float32, -bound, bound)
        return w, b

    w1, b1 = lin(ks[0], ks[1], NOBJ, REP_SIZE)
    w2, b2 = lin(ks[2], ks[3], REP_SIZE + NREL, HIDDEN)
    w3, b3 = lin(ks[4], ks[5], HIDDEN, NATTR)
    return (w1, b1, w2, b2, w3, b3)


def net_reference(x, params):
    """Pure-jnp reference of the torch forward (for correctness check)."""
    w1, b1, w2, b2, w3, b3 = params
    x = x.reshape(-1, IN_DIM)
    x_item, x_rel = x[:, :NOBJ], x[:, NOBJ:]
    rep = jnp.maximum(x_item @ w1 + b1, 0.0)
    rep_rel = jnp.concatenate([rep, x_rel], axis=1)
    hidden = jnp.maximum(rep_rel @ w2 + b2, 0.0)
    output = jax.nn.sigmoid(hidden @ w3 + b3)
    return output, hidden, rep


if __name__ == "__main__":
    key = jax.random.PRNGKey(0)
    kx, kp = jax.random.split(key)

    B = 8
    x = jax.random.uniform(kx, (B, IN_DIM), jnp.float32)
    params = init_params(kp)

    out, hidden, rep = jax.block_until_ready(net_forward(x, params))

    # sanity check against the plain-JAX reference
    ref_out, ref_hidden, ref_rep = net_reference(x, params)
    assert out.shape == (B, NATTR) and hidden.shape == (B, HIDDEN) and rep.shape == (B, REP_SIZE)
    assert jnp.allclose(out, ref_out, atol=1e-5)
    assert jnp.allclose(hidden, ref_hidden, atol=1e-5)
    assert jnp.allclose(rep, ref_rep, atol=1e-5)

    print("KERNEL_OK")
</pallas_src>

<mosaic_0001>
module attributes {stable_mosaic.version = 11 : i64} {
  func.func @net_kernel(%arg0: i32, %arg1: memref<8x128xf32, #tpu.memory_space<vmem>>, %arg2: memref<3x128x128xf32, #tpu.memory_space<vmem>>, %arg3: memref<8x128xf32, #tpu.memory_space<vmem>>) attributes {dimension_semantics = [#tpu.dimension_semantics<parallel>], iteration_bounds = array<i64: 1>, scalar_prefetch = 0 : i64, scratch_operands = 0 : i64, tpu.core_type = #tpu.core_type<tc>, window_params = [{transform_indices = @transform_0, window_bounds = array<i64: 8, 128>}, {pipeline_mode = #tpu.pipeline_mode<synchronous>, transform_indices = @transform_1, window_bounds = array<i64: 3, 128, 128>}, {transform_indices = @transform_2, window_bounds = array<i64: 8, 128>}]} {
    %c0 = arith.constant 0 : index
    %c0_0 = arith.constant 0 : index
    %0 = vector.load %arg1[%c0, %c0_0] : memref<8x128xf32, #tpu.memory_space<vmem>>, vector<8x128xf32>
    %1 = tpu.iota {dimensions = array<i32: 1>} : vector<8x128xi32>
    %c0_1 = arith.constant 0 : index
    %c0_2 = arith.constant 0 : index
    %c0_3 = arith.constant 0 : index
    %2 = vector.load %arg2[%c0_1, %c0_2, %c0_3] : memref<3x128x128xf32, #tpu.memory_space<vmem>>, vector<1x128x128xf32>
    %3 = vector.shape_cast %2 : vector<1x128x128xf32> to vector<128x128xf32>
    %cst = arith.constant dense<0.000000e+00> : vector<8x128xf32>
    %4 = tpu.matmul %0, %3, %cst {dimension_numbers = #tpu.dot_dimension_numbers<[1], [0], [0], [1], [0, 0, 1, 1], [], []>} : vector<8x128xf32>, vector<128x128xf32>, vector<8x128xf32> -> vector<8x128xf32>
    %cst_4 = arith.constant 0.000000e+00 : f32
    %5 = vector.broadcast %cst_4 : f32 to vector<8x128xf32>
    %6 = arith.maximumf %4, %5 : vector<8x128xf32>
    %c8_i32 = arith.constant 8 : i32
    %7 = vector.broadcast %c8_i32 : i32 to vector<8x128xi32>
    %8 = arith.cmpi slt, %1, %7 : vector<8x128xi32>
    %9 = arith.select %8, %6, %0 : vector<8x128xi1>, vector<8x128xf32>
    %c1 = arith.constant 1 : index
    %c0_5 = arith.constant 0 : index
    %c0_6 = arith.constant 0 : index
    %10 = vector.load %arg2[%c1, %c0_5, %c0_6] : memref<3x128x128xf32, #tpu.memory_space<vmem>>, vector<1x128x128xf32>
    %11 = vector.shape_cast %10 : vector<1x128x128xf32> to vector<128x128xf32>
    %cst_7 = arith.constant dense<0.000000e+00> : vector<8x128xf32>
    %12 = tpu.matmul %9, %11, %cst_7 {dimension_numbers = #tpu.dot_dimension_numbers<[1], [0], [0], [1], [0, 0, 1, 1], [], []>} : vector<8x128xf32>, vector<128x128xf32>, vector<8x128xf32> -> vector<8x128xf32>
    %cst_8 = arith.constant 0.000000e+00 : f32
    %13 = vector.broadcast %cst_8 : f32 to vector<8x128xf32>
    %14 = arith.maximumf %12, %13 : vector<8x128xf32>
    %c2 = arith.constant 2 : index
    %c0_9 = arith.constant 0 : index
    %c0_10 = arith.constant 0 : index
    %15 = vector.load %arg2[%c2, %c0_9, %c0_10] : memref<3x128x128xf32, #tpu.memory_space<vmem>>, vector<1x128x128xf32>
    %16 = vector.shape_cast %15 : vector<1x128x128xf32> to vector<128x128xf32>
    %cst_11 = arith.constant dense<0.000000e+00> : vector<8x128xf32>
    %17 = tpu.matmul %14, %16, %cst_11 {dimension_numbers = #tpu.dot_dimension_numbers<[1], [0], [0], [1], [0, 0, 1, 1], [], []>} : vector<8x128xf32>, vector<128x128xf32>, vector<8x128xf32> -> vector<8x128xf32>
    %18 = arith.negf %17 : vector<8x128xf32>
    %19 = math.exp %18 : vector<8x128xf32>
    %cst_12 = arith.constant 1.000000e+00 : f32
    %20 = vector.broadcast %cst_12 : f32 to vector<8x128xf32>
    %21 = arith.addf %20, %19 : vector<8x128xf32>
    %22 = arith.divf %20, %21 : vector<8x128xf32>
    %c48_i32 = arith.constant 48 : i32
    %23 = vector.broadcast %c48_i32 : i32 to vector<8x128xi32>
    %24 = arith.cmpi slt, %1, %23 : vector<8x128xi32>
    %25 = arith.addf %6, %14 : vector<8x128xf32>
    %26 = arith.select %24, %25, %22 : vector<8x128xi1>, vector<8x128xf32>
    %c0_13 = arith.constant 0 : index
    %c0_14 = arith.constant 0 : index
    %27 = vector.load %arg3[%c0_13, %c0_14] : memref<8x128xf32, #tpu.memory_space<vmem>>, vector<8x128xf32>
    tpu.vector_store %arg3[%c0_13, %c0_14], %26 {strides = array<i32>} : memref<8x128xf32, #tpu.memory_space<vmem>>, vector<8x128xf32>,
    return
  }
  func.func @transform_0(%arg0: i32) -> (i32, i32) {
    %c0_i32 = arith.constant 0 : i32
    %c0_i32_0 = arith.constant 0 : i32
    return %arg0, %c0_i32 : i32, i32
  }
  func.func @transform_1(%arg0: i32) -> (i32, i32, i32) {
    %c0_i32 = arith.constant 0 : i32
    %c0_i32_0 = arith.constant 0 : i32
    %c0_i32_1 = arith.constant 0 : i32
    %c0_i32_2 = arith.constant 0 : i32
    return %c0_i32, %c0_i32_0, %c0_i32_1 : i32, i32, i32
  }
  func.func @transform_2(%arg0: i32) -> (i32, i32) {
    %c0_i32 = arith.constant 0 : i32
    %c0_i32_0 = arith.constant 0 : i32
    return %arg0, %c0_i32 : i32, i32
  }
}

</mosaic_0001>

<llo_original>
// kernel: net_forward.1
$region0: #{net_forward.1}
  #allocation0 [shape = 'u32[]', space=smem, size = 0x4, offset = 0x4, fixed_abs, tag = 'smem constant byte address 0x4 - core index']
  #allocation1 [shape = 'u32[144,128]{1,0:T(1,128)}', space=vmem, size = 0x12000, scoped, tag = 'internal scratch']
  %s0 = inlined_call_operand.vmem [shape: f32[8,128], index: 0, kind: input, shape index: {}]
  %s1 = inlined_call_operand.vmem [shape: f32[3,128,128], index: 1, kind: input, shape index: {}]
  %s2 = inlined_call_operand.vmem [shape: f32[8,128], index: 2, kind: output, shape index: {}]
  %s3 = sld [smem:[#allocation0]]
  $region18: #{net_forward.1} parent=0
    _
  %s5 = ssub.s32 1, %s3
  %s6 = scalar_select 0, %s5, %s3
  // Predicated region
  $region2: #{net_forward.1} parent=0 // pred_check
    _
  $region3: #{net_forward.1} parent=0 // pred_check_branch
    %8 = sbr.rel (0) target = $region5
  $region4: #{net_forward.1} parent=0 // pred_region
    _
  $region5: #{net_forward.1} parent=0 // pred_fallthru
    _
  // Predicated region
  $region6: #{net_forward.1} parent=0 // pred_check
    _
  $region7: #{net_forward.1} parent=0 // pred_check_branch
    %10 = sbr.rel (0) target = $region9
  $region8: #{net_forward.1} parent=0 // pred_region
    _
  $region9: #{net_forward.1} parent=0 // pred_fallthru
    _
  %v11 = vld [vmem:[%s0] sm:$0xff]
  %v12 = vlaneseq
  %v13 = vand.u32 %v12, 127
  %v14 = vld [vmem:[%s1] sm:$0xff]
  %v15 = vld [vmem:[%s1 + $0x8] sm:$0xff]
  %v16 = vld [vmem:[%s1 + $0x10] sm:$0xff]
  %v17 = vld [vmem:[%s1 + $0x18] sm:$0xff]
  %v18 = vld [vmem:[%s1 + $0x20] sm:$0xff]
  %v19 = vld [vmem:[%s1 + $0x28] sm:$0xff]
  %v20 = vld [vmem:[%s1 + $0x30] sm:$0xff]
  %v21 = vld [vmem:[%s1 + $0x38] sm:$0xff]
  %v22 = vld [vmem:[%s1 + $0x40] sm:$0xff]
  %v23 = vld [vmem:[%s1 + $0x48] sm:$0xff]
  %v24 = vld [vmem:[%s1 + $0x50] sm:$0xff]
  %v25 = vld [vmem:[%s1 + $0x58] sm:$0xff]
  %v26 = vld [vmem:[%s1 + $0x60] sm:$0xff]
  %v27 = vld [vmem:[%s1 + $0x68] sm:$0xff]
  %v28 = vld [vmem:[%s1 + $0x70] sm:$0xff]
  %v29 = vld [vmem:[%s1 + $0x78] sm:$0xff]
  %30 = vmatprep.subr.mxu0 0.0
  %31 = vmatpush1.msra.mxu0 %v14
  %32 = vmatprep.subr.mxu0 0.0
  %33 = vmatpush1.msra.mxu0 %v15
  %34 = vmatprep.subr.mxu0 0.0
  %35 = vmatpush1.msra.mxu0 %v16
  %36 = vmatprep.subr.mxu0 0.0
  %37 = vmatpush1.msra.mxu0 %v17
  %38 = vmatprep.subr.mxu0 0.0
  %39 = vmatpush1.msra.mxu0 %v18
  %40 = vmatprep.subr.mxu0 0.0
  %41 = vmatpush1.msra.mxu0 %v19
  %42 = vmatprep.subr.mxu0 0.0
  %43 = vmatpush1.msra.mxu0 %v20
  %44 = vmatprep.subr.mxu0 0.0
  %45 = vmatpush1.msra.mxu0 %v21
  %46 = vmatprep.subr.mxu0 0.0
  %47 = vmatpush1.msra.mxu0 %v22
  %48 = vmatprep.subr.mxu0 0.0
  %49 = vmatpush1.msra.mxu0 %v23
  %50 = vmatprep.subr.mxu0 0.0
  %51 = vmatpush1.msra.mxu0 %v24
  %52 = vmatprep.subr.mxu0 0.0
  %53 = vmatpush1.msra.mxu0 %v25
  %54 = vmatprep.subr.mxu0 0.0
  %55 = vmatpush1.msra.mxu0 %v26
  %56 = vmatprep.subr.mxu0 0.0
  %57 = vmatpush1.msra.mxu0 %v27
  %58 = vmatprep.subr.mxu0 0.0
  %59 = vmatpush1.msra.mxu0 %v28
  %60 = vmatprep.subr.mxu0 0.0
  %61 = vmatpush1.msra.mxu0 %v29
  %62 = vmatprep.subr.mxu0 0.0
  %63 = vmatpush1.msra.mxu0 0.0
  %64 = vmatprep.subr.mxu0 0.0
  %65 = vmatpush1.msra.mxu0 0.0
  %66 = vmatprep.subr.mxu0 0.0
  %67 = vmatpush1.msra.mxu0 0.0
  %68 = vmatprep.subr.mxu0 0.0
  %69 = vmatpush1.msra.mxu0 0.0
  %70 = vmatprep.subr.mxu0 0.0
  %71 = vmatpush1.msra.mxu0 0.0
  %72 = vmatprep.subr.mxu0 0.0
  %73 = vmatpush1.msra.mxu0 0.0
  %74 = vmatprep.subr.mxu0 0.0
  %75 = vmatpush1.msra.mxu0 0.0
  %76 = vmatprep.subr.mxu0 0.0
  %77 = vmatpush1.msra.mxu0 0.0
  %78 = vmatprep.subr.mxu0 0.0
  %79 = vmatpush1.msra.mxu0 0.0
  %80 = vmatprep.subr.mxu0 0.0
  %81 = vmatpush1.msra.mxu0 0.0
  %82 = vmatprep.subr.mxu0 0.0
  %83 = vmatpush1.msra.mxu0 0.0
  %84 = vmatprep.subr.mxu0 0.0
  %85 = vmatpush1.msra.mxu0 0.0
  %86 = vmatprep.subr.mxu0 0.0
  %87 = vmatpush1.msra.mxu0 0.0
  %88 = vmatprep.subr.mxu0 0.0
  %89 = vmatpush1.msra.mxu0 0.0
  %90 = vmatprep.subr.mxu0 0.0
  %91 = vmatpush1.msra.mxu0 0.0
  %92 = vmatprep.subr.mxu0 0.0
  %93 = vmatpush1.msra.mxu0 0.0
  %94 = vmatprep.mubr.f32.mxu0 0.0
  %95 = vmatmul.mubr.f32.gmra.mrb[0].mxu0 %v11
  %v96 = vpop.f32.mrb[0].mxu0
  %v97 = vadd.f32 0.0, %v96
  %v98 = vpop.f32.mrb[0].mxu0
  %99 = vdwg.mxu0
  %v100 = vmax.f32 %v97, 0.0
  %vm101 = vcmp.lt.s32.totalorder %v13, 8
  %v102 = vsel %vm101, %v100, %v11
  %s103 = scalar_lea.vmem %s1, 128
  %v104 = vld [vmem:[%s103] sm:$0xff]
  %v105 = vld [vmem:[%s103 + $0x8] sm:$0xff]
  %v106 = vld [vmem:[%s103 + $0x10] sm:$0xff]
  %v107 = vld [vmem:[%s103 + $0x18] sm:$0xff]
  %v108 = vld [vmem:[%s103 + $0x20] sm:$0xff]
  %v109 = vld [vmem:[%s103 + $0x28] sm:$0xff]
  %v110 = vld [vmem:[%s103 + $0x30] sm:$0xff]
  %v111 = vld [vmem:[%s103 + $0x38] sm:$0xff]
  %v112 = vld [vmem:[%s103 + $0x40] sm:$0xff]
  %v113 = vld [vmem:[%s103 + $0x48] sm:$0xff]
  %v114 = vld [vmem:[%s103 + $0x50] sm:$0xff]
  %v115 = vld [vmem:[%s103 + $0x58] sm:$0xff]
  %v116 = vld [vmem:[%s103 + $0x60] sm:$0xff]
  %v117 = vld [vmem:[%s103 + $0x68] sm:$0xff]
  %v118 = vld [vmem:[%s103 + $0x70] sm:$0xff]
  %v119 = vld [vmem:[%s103 + $0x78] sm:$0xff]
  %120 = vmatprep.subr.mxu0 0.0
  %121 = vmatpush1.msra.mxu0 %v104
  %122 = vmatprep.subr.mxu0 0.0
  %123 = vmatpush1.msra.mxu0 %v105
  %124 = vmatprep.subr.mxu0 0.0
  %125 = vmatpush1.msra.mxu0 %v106
  %126 = vmatprep.subr.mxu0 0.0
  %127 = vmatpush1.msra.mxu0 %v107
  %128 = vmatprep.subr.mxu0 0.0
  %129 = vmatpush1.msra.mxu0 %v108
  %130 = vmatprep.subr.mxu0 0.0
  %131 = vmatpush1.msra.mxu0 %v109
  %132 = vmatprep.subr.mxu0 0.0
  %133 = vmatpush1.msra.mxu0 %v110
  %134 = vmatprep.subr.mxu0 0.0
  %135 = vmatpush1.msra.mxu0 %v111
  %136 = vmatprep.subr.mxu0 0.0
  %137 = vmatpush1.msra.mxu0 %v112
  %138 = vmatprep.subr.mxu0 0.0
  %139 = vmatpush1.msra.mxu0 %v113
  %140 = vmatprep.subr.mxu0 0.0
  %141 = vmatpush1.msra.mxu0 %v114
  %142 = vmatprep.subr.mxu0 0.0
  %143 = vmatpush1.msra.mxu0 %v115
  %144 = vmatprep.subr.mxu0 0.0
  %145 = vmatpush1.msra.mxu0 %v116
  %146 = vmatprep.subr.mxu0 0.0
  %147 = vmatpush1.msra.mxu0 %v117
  %148 = vmatprep.subr.mxu0 0.0
  %149 = vmatpush1.msra.mxu0 %v118
  %150 = vmatprep.subr.mxu0 0.0
  %151 = vmatpush1.msra.mxu0 %v119
  %152 = vmatprep.subr.mxu0 0.0
  %153 = vmatpush1.msra.mxu0 0.0
  %154 = vmatprep.subr.mxu0 0.0
  %155 = vmatpush1.msra.mxu0 0.0
  %156 = vmatprep.subr.mxu0 0.0
  %157 = vmatpush1.msra.mxu0 0.0
  %158 = vmatprep.subr.mxu0 0.0
  %159 = vmatpush1.msra.mxu0 0.0
  %160 = vmatprep.subr.mxu0 0.0
  %161 = vmatpush1.msra.mxu0 0.0
  %162 = vmatprep.subr.mxu0 0.0
  %163 = vmatpush1.msra.mxu0 0.0
  %164 = vmatprep.subr.mxu0 0.0
  %165 = vmatpush1.msra.mxu0 0.0
  %166 = vmatprep.subr.mxu0 0.0
  %167 = vmatpush1.msra.mxu0 0.0
  %168 = vmatprep.subr.mxu0 0.0
  %169 = vmatpush1.msra.mxu0 0.0
  %170 = vmatprep.subr.mxu0 0.0
  %171 = vmatpush1.msra.mxu0 0.0
  %172 = vmatprep.subr.mxu0 0.0
  %173 = vmatpush1.msra.mxu0 0.0
  %174 = vmatprep.subr.mxu0 0.0
  %175 = vmatpush1.msra.mxu0 0.0
  %176 = vmatprep.subr.mxu0 0.0
  %177 = vmatpush1.msra.mxu0 0.0
  %178 = vmatprep.subr.mxu0 0.0
  %179 = vmatpush1.msra.mxu0 0.0
  %180 = vmatprep.subr.mxu0 0.0
  %181 = vmatpush1.msra.mxu0 0.0
  %182 = vmatprep.subr.mxu0 0.0
  %183 = vmatpush1.msra.mxu0 0.0
  %184 = vmatprep.mubr.f32.mxu0 0.0
  %185 = vmatmul.mubr.f32.gmra.mrb[0].mxu0 %v102
  %v186 = vpop.f32.mrb[0].mxu0
  %v187 = vadd.f32 0.0, %v186
  %v188 = vpop.f32.mrb[0].mxu0
  %189 = vdwg.mxu0
  %v190 = vmax.f32 %v187, 0.0
  %s191 = scalar_lea.vmem %s1, 256
  %v192 = vld [vmem:[%s191] sm:$0xff]
  %v193 = vld [vmem:[%s191 + $0x8] sm:$0xff]
  %v194 = vld [vmem:[%s191 + $0x10] sm:$0xff]
  %v195 = vld [vmem:[%s191 + $0x18] sm:$0xff]
  %v196 = vld [vmem:[%s191 + $0x20] sm:$0xff]
  %v197 = vld [vmem:[%s191 + $0x28] sm:$0xff]
  %v198 = vld [vmem:[%s191 + $0x30] sm:$0xff]
  %v199 = vld [vmem:[%s191 + $0x38] sm:$0xff]
  %v200 = vld [vmem:[%s191 + $0x40] sm:$0xff]
  %v201 = vld [vmem:[%s191 + $0x48] sm:$0xff]
  %v202 = vld [vmem:[%s191 + $0x50] sm:$0xff]
  %v203 = vld [vmem:[%s191 + $0x58] sm:$0xff]
  %v204 = vld [vmem:[%s191 + $0x60] sm:$0xff]
  %v205 = vld [vmem:[%s191 + $0x68] sm:$0xff]
  %v206 = vld [vmem:[%s191 + $0x70] sm:$0xff]
  %v207 = vld [vmem:[%s191 + $0x78] sm:$0xff]
  %208 = vmatprep.subr.mxu0 0.0
  %209 = vmatpush1.msra.mxu0 %v192
  %210 = vmatprep.subr.mxu0 0.0
  %211 = vmatpush1.msra.mxu0 %v193
  %212 = vmatprep.subr.mxu0 0.0
  %213 = vmatpush1.msra.mxu0 %v194
  %214 = vmatprep.subr.mxu0 0.0
  %215 = vmatpush1.msra.mxu0 %v195
  %216 = vmatprep.subr.mxu0 0.0
  %217 = vmatpush1.msra.mxu0 %v196
  %218 = vmatprep.subr.mxu0 0.0
  %219 = vmatpush1.msra.mxu0 %v197
  %220 = vmatprep.subr.mxu0 0.0
  %221 = vmatpush1.msra.mxu0 %v198
  %222 = vmatprep.subr.mxu0 0.0
  %223 = vmatpush1.msra.mxu0 %v199
  %224 = vmatprep.subr.mxu0 0.0
  %225 = vmatpush1.msra.mxu0 %v200
  %226 = vmatprep.subr.mxu0 0.0
  %227 = vmatpush1.msra.mxu0 %v201
  %228 = vmatprep.subr.mxu0 0.0
  %229 = vmatpush1.msra.mxu0 %v202
  %230 = vmatprep.subr.mxu0 0.0
  %231 = vmatpush1.msra.mxu0 %v203
  %232 = vmatprep.subr.mxu0 0.0
  %233 = vmatpush1.msra.mxu0 %v204
  %234 = vmatprep.subr.mxu0 0.0
  %235 = vmatpush1.msra.mxu0 %v205
  %236 = vmatprep.subr.mxu0 0.0
  %237 = vmatpush1.msra.mxu0 %v206
  %238 = vmatprep.subr.mxu0 0.0
  %239 = vmatpush1.msra.mxu0 %v207
  %240 = vmatprep.subr.mxu0 0.0
  %241 = vmatpush1.msra.mxu0 0.0
  %242 = vmatprep.subr.mxu0 0.0
  %243 = vmatpush1.msra.mxu0 0.0
  %244 = vmatprep.subr.mxu0 0.0
  %245 = vmatpush1.msra.mxu0 0.0
  %246 = vmatprep.subr.mxu0 0.0
  %247 = vmatpush1.msra.mxu0 0.0
  %248 = vmatprep.subr.mxu0 0.0
  %249 = vmatpush1.msra.mxu0 0.0
  %250 = vmatprep.subr.mxu0 0.0
  %251 = vmatpush1.msra.mxu0 0.0
  %252 = vmatprep.subr.mxu0 0.0
  %253 = vmatpush1.msra.mxu0 0.0
  %254 = vmatprep.subr.mxu0 0.0
  %255 = vmatpush1.msra.mxu0 0.0
  %256 = vmatprep.subr.mxu0 0.0
  %257 = vmatpush1.msra.mxu0 0.0
  %258 = vmatprep.subr.mxu0 0.0
  %259 = vmatpush1.msra.mxu0 0.0
  %260 = vmatprep.subr.mxu0 0.0
  %261 = vmatpush1.msra.mxu0 0.0
  %262 = vmatprep.subr.mxu0 0.0
  %263 = vmatpush1.msra.mxu0 0.0
  %264 = vmatprep.subr.mxu0 0.0
  %265 = vmatpush1.msra.mxu0 0.0
  %266 = vmatprep.subr.mxu0 0.0
  %267 = vmatpush1.msra.mxu0 0.0
  %268 = vmatprep.subr.mxu0 0.0
  %269 = vmatpush1.msra.mxu0 0.0
  %270 = vmatprep.subr.mxu0 0.0
  %271 = vmatpush1.msra.mxu0 0.0
  %272 = vmatprep.mubr.f32.mxu0 0.0
  %273 = vmatmul.mubr.f32.gmra.mrb[0].mxu0 %v190
  %v274 = vpop.f32.mrb[0].mxu0
  %v275 = vadd.f32 0.0, %v274
  %v276 = vpop.f32.mrb[0].mxu0
  %277 = vdwg.mxu0
  %v278 = vxor.u32 %v275, 2147483648
  %v279 = vmul.f32 %v278, 1.442695
  %v280 = vpow.pop %v279
  %v281 = vadd.f32 %v280, 1.0
  %v282 = vrcp.pop %v281
  %v283 = vmul.f32 1.0, %v282
  %vm284 = vcmp.lt.s32.totalorder %v13, 48
  %v285 = vadd.f32 %v100, %v190
  %v286 = vsel %vm284, %v285, %v283
  %287 = vst [vmem:[%s2] sm:$0xff] %v286
  // Predicated region
  $region10: #{net_forward.1} parent=0 // pred_check
    _
  $region11: #{net_forward.1} parent=0 // pred_check_branch
    %289 = sbr.rel (0) target = $region13
  $region12: #{net_forward.1} parent=0 // pred_region
    _
  $region13: #{net_forward.1} parent=0 // pred_fallthru
    _
  // Predicated region
  $region14: #{net_forward.1} parent=0 // pred_check
    _
  $region15: #{net_forward.1} parent=0 // pred_check_branch
    %291 = sbr.rel (0) target = $region17
  $region16: #{net_forward.1} parent=0 // pred_region
    _
  $region17: #{net_forward.1} parent=0 // pred_fallthru
    _

</llo_original>
